<compile_context>
chip_gen: v7x
topology: tpu7x:2x2x1
jax: 0.10.0
libtpu: 0.0.40
codegen_flags: <defaults>
</compile_context>

<pallas_src>
import functools

import jax
import jax.numpy as jnp
from jax import lax
from jax.experimental import pallas as pl
from jax.experimental.pallas import tpu as pltpu

IN_DIM = 13
HID_DIM = 128
OUT_DIM = 1


def _sigmoid(z):
    # sigmoid(z) == 0.5 * tanh(0.5 * z) + 0.5 : a single EUP transcendental;
    # the scale/shift are cheap VALU ops with slack.
    return 0.5 * jnp.tanh(0.5 * z) + 0.5


def mlp_kernel(x_ref, w1_ref, b1_ref, w2_ref, b2_ref, o_ref):
    # x_ref:  (TB, 13)  natural batch-major input tile
    # w1_ref: (128, 13) fc1 weight, PyTorch (out, in) layout
    # b1_ref: (128, 1)  fc1 bias column (broadcast over lanes)
    # w2_ref: (1, 128)  fc2 weight row, PyTorch layout
    # b2_ref: (1, 1)    fc2 bias scalar in SMEM
    # o_ref:  (1, TB)   lane-dense output tile
    #
    # First layer: W1 @ X^T via dot_general contracting dim 1 of BOTH
    # operands (A @ B^T form, natively supported by the MXU), so the hidden
    # activation comes out feature-major / lane-dense: (128, TB).
    h = lax.dot_general(
        w1_ref[...], x_ref[...],
        dimension_numbers=(((1,), (1,)), ((), ())),
        preferred_element_type=jnp.float32,
    )
    h = _sigmoid(h + b1_ref[...])                                # (128, TB)
    # Second layer on the otherwise-idle MXU: (1,128) @ (128,TB) -> (1,TB).
    y = jnp.dot(w2_ref[...], h, preferred_element_type=jnp.float32) + b2_ref[0, 0]
    o_ref[...] = _sigmoid(y)                                     # (1, TB)


def _round_up(x, m):
    return (x + m - 1) // m * m


@functools.partial(jax.jit, static_argnames=("tb",))
def model2_2_forward(x, w1, b1, w2, b2, *, tb=2048):
    """Forward pass of Model2_2.

    x : (B, 13) float32
    Weights in PyTorch nn.Linear layout: w1 (128, 13), b1 (128,),
    w2 (1, 128), b2 (1,).  Returns (B, 1) float32.
    """
    B = x.shape[0]
    # Lane-dense batch tile (multiple of 128).  Large default amortizes the
    # ~0.35us per-grid-step overhead; clamp to the (128-rounded) batch.
    tb = max(128, min(tb, _round_up(B, 128)))
    # Keep >= 2 grid steps when possible so the "parallel" batch axis really
    # shards across v7x's two TensorCores (harmless on single-TC v5e/v6e).
    if B > 128:
        tb = min(tb, _round_up(pl.cdiv(B, 2), 128))
    n_blk = pl.cdiv(B, tb)
    b_pad = n_blk * tb

    b1_col = b1.reshape(HID_DIM, 1)
    w2_row = w2.reshape(OUT_DIM, HID_DIM)
    b2_sc = b2.reshape(1, 1)

    out_t = pl.pallas_call(
        mlp_kernel,
        out_shape=jax.ShapeDtypeStruct((OUT_DIM, b_pad), jnp.float32),
        grid=(n_blk,),
        in_specs=[
            # Natural (B, 13) input, tiled over the batch.  The ragged last
            # block is handled by Pallas boundary-block semantics; garbage
            # columns only produce garbage outputs that get sliced away.
            pl.BlockSpec((tb, IN_DIM), lambda i: (i, 0)),
            pl.BlockSpec((HID_DIM, IN_DIM), lambda i: (0, 0)),   # w1 resident
            pl.BlockSpec((HID_DIM, 1), lambda i: (0, 0)),        # b1 resident
            pl.BlockSpec((OUT_DIM, HID_DIM), lambda i: (0, 0)),  # w2 resident
            pl.BlockSpec(memory_space=pltpu.MemorySpace.SMEM),   # b2 scalar
        ],
        out_specs=pl.BlockSpec((OUT_DIM, tb), lambda i: (0, i)),
        compiler_params=pltpu.CompilerParams(
            dimension_semantics=("parallel",),
        ),
    )(x, w1, b1_col, w2_row, b2_sc)

    return out_t[:, :B].T                                        # (B, 1)


def reference_forward(x, w1, b1, w2, b2):
    h = jax.nn.sigmoid(x @ w1.T + b1)
    return jax.nn.sigmoid(h @ w2.T + b2)


if __name__ == "__main__":
    key = jax.random.PRNGKey(0)
    k_x, k_w1, k_b1, k_w2, k_b2 = jax.random.split(key, 5)

    # Deterministic parameter init in PyTorch nn.Linear (out, in) layout.
    bound1 = 1.0 / (IN_DIM ** 0.5)
    w1 = jax.random.uniform(k_w1, (HID_DIM, IN_DIM), jnp.float32, -bound1, bound1)
    b1 = jax.random.uniform(k_b1, (HID_DIM,), jnp.float32, -bound1, bound1)
    bound2 = 1.0 / (HID_DIM ** 0.5)
    w2 = jax.random.uniform(k_w2, (OUT_DIM, HID_DIM), jnp.float32, -bound2, bound2)
    b2 = jax.random.uniform(k_b2, (OUT_DIM,), jnp.float32, -bound2, bound2)

    # Small demo batch (single lane-dense tile) ...
    B_small = 8
    x_small = jax.random.normal(k_x, (B_small, IN_DIM), dtype=jnp.float32)
    out_small = jax.block_until_ready(model2_2_forward(x_small, w1, b1, w2, b2))
    ref_small = reference_forward(x_small, w1, b1, w2, b2)
    assert out_small.shape == (B_small, OUT_DIM)
    err_small = float(jnp.max(jnp.abs(out_small - ref_small)))
    assert jnp.allclose(out_small, ref_small, atol=1e-5, rtol=1e-5), err_small

    # ... and a multi-tile / ragged-last-tile batch to exercise the grid path.
    B_big = 300
    x_big = jax.random.normal(k_x, (B_big, IN_DIM), dtype=jnp.float32)
    out_big = jax.block_until_ready(model2_2_forward(x_big, w1, b1, w2, b2))
    ref_big = reference_forward(x_big, w1, b1, w2, b2)
    assert out_big.shape == (B_big, OUT_DIM)
    err_big = float(jnp.max(jnp.abs(out_big - ref_big)))
    assert jnp.allclose(out_big, ref_big, atol=1e-5, rtol=1e-5), err_big

    print("KERNEL_OK")
</pallas_src>

<mosaic_0001>
module attributes {stable_mosaic.version = 11 : i64} {
  func.func @mlp_kernel(%arg0: i32, %arg1: memref<128x13xf32, #tpu.memory_space<vmem>>, %arg2: memref<128x13xf32, #tpu.memory_space<vmem>>, %arg3: memref<128x1xf32, #tpu.memory_space<vmem>>, %arg4: memref<1x128xf32, #tpu.memory_space<vmem>>, %arg5: memref<1x1xf32, #tpu.memory_space<smem>>, %arg6: memref<1x128xf32, #tpu.memory_space<vmem>>) attributes {dimension_semantics = [#tpu.dimension_semantics<parallel>], iteration_bounds = array<i64: 1>, scalar_prefetch = 0 : i64, scratch_operands = 0 : i64, tpu.core_type = #tpu.core_type<tc>, window_params = [{transform_indices = @transform_0, window_bounds = array<i64: 128, 13>}, {pipeline_mode = #tpu.pipeline_mode<synchronous>, transform_indices = @transform_1, window_bounds = array<i64: 128, 13>}, {pipeline_mode = #tpu.pipeline_mode<synchronous>, transform_indices = @transform_2, window_bounds = array<i64: 128, 1>}, {pipeline_mode = #tpu.pipeline_mode<synchronous>, transform_indices = @transform_3, window_bounds = array<i64: 1, 128>}, {transform_indices = @transform_4, window_bounds = array<i64: 1, 1>}, {transform_indices = @transform_5, window_bounds = array<i64: 1, 128>}]} {
    %c0 = arith.constant 0 : index
    %c0_0 = arith.constant 0 : index
    %0 = vector.load %arg2[%c0, %c0_0] : memref<128x13xf32, #tpu.memory_space<vmem>>, vector<128x13xf32>
    %c0_1 = arith.constant 0 : index
    %c0_2 = arith.constant 0 : index
    %1 = vector.load %arg1[%c0_1, %c0_2] : memref<128x13xf32, #tpu.memory_space<vmem>>, vector<128x13xf32>
    %cst = arith.constant dense<0.000000e+00> : vector<128x128xf32>
    %2 = tpu.matmul %0, %1, %cst {dimension_numbers = #tpu.dot_dimension_numbers<[1], [1], [0], [0], [0, 0, 1, 0], [], []>} : vector<128x13xf32>, vector<128x13xf32>, vector<128x128xf32> -> vector<128x128xf32>
    %c0_3 = arith.constant 0 : index
    %c0_4 = arith.constant 0 : index
    %3 = vector.load %arg3[%c0_3, %c0_4] : memref<128x1xf32, #tpu.memory_space<vmem>>, vector<128x1xf32>
    %4 = vector.broadcast %3 : vector<128x1xf32> to vector<128x128xf32>
    %5 = arith.addf %2, %4 : vector<128x128xf32>
    %cst_5 = arith.constant 5.000000e-01 : f32
    %6 = vector.broadcast %cst_5 : f32 to vector<128x128xf32>
    %7 = arith.mulf %6, %5 : vector<128x128xf32>
    %8 = math.tanh %7 : vector<128x128xf32>
    %cst_6 = arith.constant 5.000000e-01 : f32
    %9 = vector.broadcast %cst_6 : f32 to vector<128x128xf32>
    %10 = arith.mulf %9, %8 : vector<128x128xf32>
    %cst_7 = arith.constant 5.000000e-01 : f32
    %11 = vector.broadcast %cst_7 : f32 to vector<128x128xf32>
    %12 = arith.addf %10, %11 : vector<128x128xf32>
    %c0_8 = arith.constant 0 : index
    %c0_9 = arith.constant 0 : index
    %13 = vector.load %arg4[%c0_8, %c0_9] : memref<1x128xf32, #tpu.memory_space<vmem>>, vector<1x128xf32>
    %cst_10 = arith.constant dense<0.000000e+00> : vector<1x128xf32>
    %14 = tpu.matmul %13, %12, %cst_10 {dimension_numbers = #tpu.dot_dimension_numbers<[1], [0], [0], [1], [0, 0, 1, 1], [], []>} : vector<1x128xf32>, vector<128x128xf32>, vector<1x128xf32> -> vector<1x128xf32>
    %c0_11 = arith.constant 0 : index
    %c0_12 = arith.constant 0 : index
    %15 = memref.load %arg5[%c0_11, %c0_12] : memref<1x1xf32, #tpu.memory_space<smem>>
    %16 = vector.broadcast %15 : f32 to vector<1x128xf32>
    %17 = arith.addf %14, %16 : vector<1x128xf32>
    %cst_13 = arith.constant 5.000000e-01 : f32
    %18 = vector.broadcast %cst_13 : f32 to vector<1x128xf32>
    %19 = arith.mulf %18, %17 : vector<1x128xf32>
    %20 = math.tanh %19 : vector<1x128xf32>
    %cst_14 = arith.constant 5.000000e-01 : f32
    %21 = vector.broadcast %cst_14 : f32 to vector<1x128xf32>
    %22 = arith.mulf %21, %20 : vector<1x128xf32>
    %cst_15 = arith.constant 5.000000e-01 : f32
    %23 = vector.broadcast %cst_15 : f32 to vector<1x128xf32>
    %24 = arith.addf %22, %23 : vector<1x128xf32>
    %c0_16 = arith.constant 0 : index
    %c0_17 = arith.constant 0 : index
    %25 = vector.load %arg6[%c0_16, %c0_17] : memref<1x128xf32, #tpu.memory_space<vmem>>, vector<1x128xf32>
    tpu.vector_store %arg6[%c0_16, %c0_17], %24 {strides = array<i32>} : memref<1x128xf32, #tpu.memory_space<vmem>>, vector<1x128xf32>,
    return
  }
  func.func @transform_0(%arg0: i32) -> (i32, i32) {
    %c0_i32 = arith.constant 0 : i32
    %c0_i32_0 = arith.constant 0 : i32
    return %arg0, %c0_i32 : i32, i32
  }
  func.func @transform_1(%arg0: i32) -> (i32, i32) {
    %c0_i32 = arith.constant 0 : i32
    %c0_i32_0 = arith.constant 0 : i32
    %c0_i32_1 = arith.constant 0 : i32
    return %c0_i32, %c0_i32_0 : i32, i32
  }
  func.func @transform_2(%arg0: i32) -> (i32, i32) {
    %c0_i32 = arith.constant 0 : i32
    %c0_i32_0 = arith.constant 0 : i32
    %c0_i32_1 = arith.constant 0 : i32
    return %c0_i32, %c0_i32_0 : i32, i32
  }
  func.func @transform_3(%arg0: i32) -> (i32, i32) {
    %c0_i32 = arith.constant 0 : i32
    %c0_i32_0 = arith.constant 0 : i32
    %c0_i32_1 = arith.constant 0 : i32
    return %c0_i32, %c0_i32_0 : i32, i32
  }
  func.func @transform_4(%arg0: i32) -> (i32, i32) {
    %c0_i32 = arith.constant 0 : i32
    %c0_i32_0 = arith.constant 0 : i32
    %c0_i32_1 = arith.constant 0 : i32
    return %c0_i32, %c0_i32_0 : i32, i32
  }
  func.func @transform_5(%arg0: i32) -> (i32, i32) {
    %c0_i32 = arith.constant 0 : i32
    %c0_i32_0 = arith.constant 0 : i32
    return %c0_i32, %arg0 : i32, i32
  }
}

</mosaic_0001>

<llo_original>
// kernel: model2_2_forward.1
$region0: #{model2_2_forward.1}
  #allocation0 [shape = 'u32[]', space=smem, size = 0x4, offset = 0x4, fixed_abs, tag = 'smem constant byte address 0x4 - core index']
  #allocation1 [shape = 'u32[144,128]{1,0:T(1,128)}', space=vmem, size = 0x12000, scoped, tag = 'internal scratch']
  #allocation2 [shape = 'f32[1,1]{1,0:T(1,128)S(6)}', space=smem, size = 0x200, scoped, tag = 'scoped memory for model2_2_forward.1']
  %s0 = inlined_call_operand.vmem [shape: f32[8,13], index: 0, kind: input, shape index: {}]
  %s1 = inlined_call_operand.vmem [shape: f32[128,13], index: 1, kind: input, shape index: {}]
  %s2 = inlined_call_operand.vmem [shape: f32[128,1], index: 2, kind: input, shape index: {}]
  %s3 = inlined_call_operand.vmem [shape: f32[1,128], index: 3, kind: input, shape index: {}]
  %s4 = inlined_call_operand.<no memory space> [shape: f32[1,1], index: 4, kind: input, shape index: {}]
  %s5 = inlined_call_operand.vmem [shape: f32[1,128], index: 5, kind: output, shape index: {}]
  %s6 = sld [smem:[#allocation0]]
  $region30: #{model2_2_forward.1} parent=0
    _
  %s8 = ssub.s32 1, %s6
  %s9 = scalar_select 0, %s8, %s6
  %10 = sst [smem:[#allocation2]] %s4
  // Predicated region
  $region2: #{model2_2_forward.1} parent=0 // pred_check
    _
  $region3: #{model2_2_forward.1} parent=0 // pred_check_branch
    %12 = sbr.rel (0) target = $region5
  $region4: #{model2_2_forward.1} parent=0 // pred_region
    _
  $region5: #{model2_2_forward.1} parent=0 // pred_fallthru
    _
  // Predicated region
  $region6: #{model2_2_forward.1} parent=0 // pred_check
    _
  $region7: #{model2_2_forward.1} parent=0 // pred_check_branch
    %14 = sbr.rel (0) target = $region9
  $region8: #{model2_2_forward.1} parent=0 // pred_region
    _
  $region9: #{model2_2_forward.1} parent=0 // pred_fallthru
    _
  // Predicated region
  $region10: #{model2_2_forward.1} parent=0 // pred_check
    _
  $region11: #{model2_2_forward.1} parent=0 // pred_check_branch
    %16 = sbr.rel (0) target = $region13
  $region12: #{model2_2_forward.1} parent=0 // pred_region
    _
  $region13: #{model2_2_forward.1} parent=0 // pred_fallthru
    _
  // Predicated region
  $region14: #{model2_2_forward.1} parent=0 // pred_check
    _
  $region15: #{model2_2_forward.1} parent=0 // pred_check_branch
    %18 = sbr.rel (0) target = $region17
  $region16: #{model2_2_forward.1} parent=0 // pred_region
    _
  $region17: #{model2_2_forward.1} parent=0 // pred_fallthru
    _
  // Predicated region
  $region18: #{model2_2_forward.1} parent=0 // pred_check
    _
  $region19: #{model2_2_forward.1} parent=0 // pred_check_branch
    %20 = sbr.rel (0) target = $region21
  $region20: #{model2_2_forward.1} parent=0 // pred_region
    _
  $region21: #{model2_2_forward.1} parent=0 // pred_fallthru
    _
  %v21 = vld [vmem:[%s1] sm:$0xff]
  %v22 = vld [vmem:[%s1 + $0x8] sm:$0xff]
  %v23 = vld [vmem:[%s1 + $0x10] sm:$0xff]
  %v24 = vld [vmem:[%s1 + $0x18] sm:$0xff]
  %v25 = vld [vmem:[%s1 + $0x20] sm:$0xff]
  %v26 = vld [vmem:[%s1 + $0x28] sm:$0xff]
  %v27 = vld [vmem:[%s1 + $0x30] sm:$0xff]
  %v28 = vld [vmem:[%s1 + $0x38] sm:$0xff]
  %v29 = vld [vmem:[%s1 + $0x40] sm:$0xff]
  %v30 = vld [vmem:[%s1 + $0x48] sm:$0xff]
  %v31 = vld [vmem:[%s1 + $0x50] sm:$0xff]
  %v32 = vld [vmem:[%s1 + $0x58] sm:$0xff]
  %v33 = vld [vmem:[%s1 + $0x60] sm:$0xff]
  %v34 = vld [vmem:[%s1 + $0x68] sm:$0xff]
  %v35 = vld [vmem:[%s1 + $0x70] sm:$0xff]
  %v36 = vld [vmem:[%s1 + $0x78] sm:$0xff]
  %v37 = vld [vmem:[%s0] sm:$0xff]
  %v38 = vld [vmem:[%s0 + $0x8] sm:$0xff]
  %v39 = vld [vmem:[%s0 + $0x10] sm:$0xff]
  %v40 = vld [vmem:[%s0 + $0x18] sm:$0xff]
  %v41 = vld [vmem:[%s0 + $0x20] sm:$0xff]
  %v42 = vld [vmem:[%s0 + $0x28] sm:$0xff]
  %v43 = vld [vmem:[%s0 + $0x30] sm:$0xff]
  %v44 = vld [vmem:[%s0 + $0x38] sm:$0xff]
  %v45 = vld [vmem:[%s0 + $0x40] sm:$0xff]
  %v46 = vld [vmem:[%s0 + $0x48] sm:$0xff]
  %v47 = vld [vmem:[%s0 + $0x50] sm:$0xff]
  %v48 = vld [vmem:[%s0 + $0x58] sm:$0xff]
  %v49 = vld [vmem:[%s0 + $0x60] sm:$0xff]
  %v50 = vld [vmem:[%s0 + $0x68] sm:$0xff]
  %v51 = vld [vmem:[%s0 + $0x70] sm:$0xff]
  %v52 = vld [vmem:[%s0 + $0x78] sm:$0xff]
  %v53 = vld [vmem:[%s2] sm:$0xff]
  %v54 = vld [vmem:[%s2 + $0x8] sm:$0xff]
  %v55 = vld [vmem:[%s2 + $0x10] sm:$0xff]
  %v56 = vld [vmem:[%s2 + $0x18] sm:$0xff]
  %v57 = vld [vmem:[%s2 + $0x20] sm:$0xff]
  %v58 = vld [vmem:[%s2 + $0x28] sm:$0xff]
  %v59 = vld [vmem:[%s2 + $0x30] sm:$0xff]
  %v60 = vld [vmem:[%s2 + $0x38] sm:$0xff]
  %v61 = vld [vmem:[%s2 + $0x40] sm:$0xff]
  %v62 = vld [vmem:[%s2 + $0x48] sm:$0xff]
  %v63 = vld [vmem:[%s2 + $0x50] sm:$0xff]
  %v64 = vld [vmem:[%s2 + $0x58] sm:$0xff]
  %v65 = vld [vmem:[%s2 + $0x60] sm:$0xff]
  %v66 = vld [vmem:[%s2 + $0x68] sm:$0xff]
  %v67 = vld [vmem:[%s2 + $0x70] sm:$0xff]
  %v68 = vld [vmem:[%s2 + $0x78] sm:$0xff]
  %70 = vset.pattern.permute.xlu0 0
  %71 = vperm.xlu0 %70, %v53
  %v72 = vpop.permute.xlu0 %71
  %75 = vset.pattern.permute.xlu0 0
  %76 = vperm.xlu0 %75, %v54
  %v77 = vpop.permute.xlu0 %76
  %80 = vset.pattern.permute.xlu0 0
  %81 = vperm.xlu0 %80, %v55
  %v82 = vpop.permute.xlu0 %81
  %85 = vset.pattern.permute.xlu0 0
  %86 = vperm.xlu0 %85, %v56
  %v87 = vpop.permute.xlu0 %86
  %90 = vset.pattern.permute.xlu0 0
  %91 = vperm.xlu0 %90, %v57
  %v92 = vpop.permute.xlu0 %91
  %95 = vset.pattern.permute.xlu0 0
  %96 = vperm.xlu0 %95, %v58
  %v97 = vpop.permute.xlu0 %96
  %100 = vset.pattern.permute.xlu0 0
  %101 = vperm.xlu0 %100, %v59
  %v102 = vpop.permute.xlu0 %101
  %105 = vset.pattern.permute.xlu0 0
  %106 = vperm.xlu0 %105, %v60
  %v107 = vpop.permute.xlu0 %106
  %110 = vset.pattern.permute.xlu0 0
  %111 = vperm.xlu0 %110, %v61
  %v112 = vpop.permute.xlu0 %111
  %115 = vset.pattern.permute.xlu0 0
  %116 = vperm.xlu0 %115, %v62
  %v117 = vpop.permute.xlu0 %116
  %120 = vset.pattern.permute.xlu0 0
  %121 = vperm.xlu0 %120, %v63
  %v122 = vpop.permute.xlu0 %121
  %125 = vset.pattern.permute.xlu0 0
  %126 = vperm.xlu0 %125, %v64
  %v127 = vpop.permute.xlu0 %126
  %130 = vset.pattern.permute.xlu0 0
  %131 = vperm.xlu0 %130, %v65
  %v132 = vpop.permute.xlu0 %131
  %135 = vset.pattern.permute.xlu0 0
  %136 = vperm.xlu0 %135, %v66
  %v137 = vpop.permute.xlu0 %136
  %140 = vset.pattern.permute.xlu0 0
  %141 = vperm.xlu0 %140, %v67
  %v142 = vpop.permute.xlu0 %141
  %145 = vset.pattern.permute.xlu0 0
  %146 = vperm.xlu0 %145, %v68
  %v147 = vpop.permute.xlu0 %146
  %vm149 = vcmask 105472
  %v151 = vsel %vm149, %v21, 0
  %v154 = vsel %vm149, %v22, 0
  %v157 = vsel %vm149, %v23, 0
  %v160 = vsel %vm149, %v24, 0
  %v163 = vsel %vm149, %v25, 0
  %v166 = vsel %vm149, %v26, 0
  %v169 = vsel %vm149, %v27, 0
  %v172 = vsel %vm149, %v28, 0
  %v175 = vsel %vm149, %v29, 0
  %v178 = vsel %vm149, %v30, 0
  %v181 = vsel %vm149, %v31, 0
  %v184 = vsel %vm149, %v32, 0
  %v187 = vsel %vm149, %v33, 0
  %v190 = vsel %vm149, %v34, 0
  %v193 = vsel %vm149, %v35, 0
  %v196 = vsel %vm149, %v36, 0
  %v199 = vsel %vm149, %v37, 0
  %v202 = vsel %vm149, %v38, 0
  %v205 = vsel %vm149, %v39, 0
  %v208 = vsel %vm149, %v40, 0
  %v211 = vsel %vm149, %v41, 0
  %v214 = vsel %vm149, %v42, 0
  %v217 = vsel %vm149, %v43, 0
  %v220 = vsel %vm149, %v44, 0
  %v223 = vsel %vm149, %v45, 0
  %v226 = vsel %vm149, %v46, 0
  %v229 = vsel %vm149, %v47, 0
  %v232 = vsel %vm149, %v48, 0
  %v235 = vsel %vm149, %v49, 0
  %v238 = vsel %vm149, %v50, 0
  %v241 = vsel %vm149, %v51, 0
  %v244 = vsel %vm149, %v52, 0
  %246 = vmatprep.subr.mxu0 0.0
  %247 = vmatpush1.xpose.msra.mxu0 %v199
  %248 = vmatprep.subr.mxu0 0.0
  %249 = vmatpush1.xpose.msra.mxu0 %v202
  %250 = vmatprep.subr.mxu0 0.0
  %251 = vmatpush1.xpose.msra.mxu0 %v205
  %252 = vmatprep.subr.mxu0 0.0
  %253 = vmatpush1.xpose.msra.mxu0 %v208
  %254 = vmatprep.subr.mxu0 0.0
  %255 = vmatpush1.xpose.msra.mxu0 %v211
  %256 = vmatprep.subr.mxu0 0.0
  %257 = vmatpush1.xpose.msra.mxu0 %v214
  %258 = vmatprep.subr.mxu0 0.0
  %259 = vmatpush1.xpose.msra.mxu0 %v217
  %260 = vmatprep.subr.mxu0 0.0
  %261 = vmatpush1.xpose.msra.mxu0 %v220
  %262 = vmatprep.subr.mxu0 0.0
  %263 = vmatpush1.xpose.msra.mxu0 %v223
  %264 = vmatprep.subr.mxu0 0.0
  %265 = vmatpush1.xpose.msra.mxu0 %v226
  %266 = vmatprep.subr.mxu0 0.0
  %267 = vmatpush1.xpose.msra.mxu0 %v229
  %268 = vmatprep.subr.mxu0 0.0
  %269 = vmatpush1.xpose.msra.mxu0 %v232
  %270 = vmatprep.subr.mxu0 0.0
  %271 = vmatpush1.xpose.msra.mxu0 %v235
  %272 = vmatprep.subr.mxu0 0.0
  %273 = vmatpush1.xpose.msra.mxu0 %v238
  %274 = vmatprep.subr.mxu0 0.0
  %275 = vmatpush1.xpose.msra.mxu0 %v241
  %276 = vmatprep.subr.mxu0 0.0
  %277 = vmatpush1.xpose.msra.mxu0 %v244
  %278 = vmatprep.subr.mxu0 0.0
  %279 = vmatpush1.xpose.msra.mxu0 0.0
  %280 = vmatprep.subr.mxu0 0.0
  %281 = vmatpush1.xpose.msra.mxu0 0.0
  %282 = vmatprep.subr.mxu0 0.0
  %283 = vmatpush1.xpose.msra.mxu0 0.0
  %284 = vmatprep.subr.mxu0 0.0
  %285 = vmatpush1.xpose.msra.mxu0 0.0
  %286 = vmatprep.subr.mxu0 0.0
  %287 = vmatpush1.xpose.msra.mxu0 0.0
  %288 = vmatprep.subr.mxu0 0.0
  %289 = vmatpush1.xpose.msra.mxu0 0.0
  %290 = vmatprep.subr.mxu0 0.0
  %291 = vmatpush1.xpose.msra.mxu0 0.0
  %292 = vmatprep.subr.mxu0 0.0
  %293 = vmatpush1.xpose.msra.mxu0 0.0
  %294 = vmatprep.subr.mxu0 0.0
  %295 = vmatpush1.xpose.msra.mxu0 0.0
  %296 = vmatprep.subr.mxu0 0.0
  %297 = vmatpush1.xpose.msra.mxu0 0.0
  %298 = vmatprep.subr.mxu0 0.0
  %299 = vmatpush1.xpose.msra.mxu0 0.0
  %300 = vmatprep.subr.mxu0 0.0
  %301 = vmatpush1.xpose.msra.mxu0 0.0
  %302 = vmatprep.subr.mxu0 0.0
  %303 = vmatpush1.xpose.msra.mxu0 0.0
  %304 = vmatprep.subr.mxu0 0.0
  %305 = vmatpush1.xpose.msra.mxu0 0.0
  %306 = vmatprep.subr.mxu0 0.0
  %307 = vmatpush1.xpose.msra.mxu0 0.0
  %308 = vmatprep.subr.mxu0 0.0
  %309 = vmatpush1.xpose.msra.mxu0 0.0
  %310 = vmatprep.mubr.f32.mxu0 0.0
  %311 = vmatmul.mubr.f32.gmra.mrb[0].mxu0 %v151
  %v312 = vpop.f32.mrb[0].mxu0
  %v313 = vadd.f32 %v72, %v312
  %v314 = vpop.f32.mrb[0].mxu0
  %315 = vmatprep.mubr.f32.mxu0 0.0
  %316 = vmatmul.mubr.f32.gmra.mrb[0].mxu0 %v154
  %v317 = vpop.f32.mrb[0].mxu0
  %v318 = vadd.f32 %v77, %v317
  %v319 = vpop.f32.mrb[0].mxu0
  %320 = vmatprep.mubr.f32.mxu0 0.0
  %321 = vmatmul.mubr.f32.gmra.mrb[0].mxu0 %v157
  %v322 = vpop.f32.mrb[0].mxu0
  %v323 = vadd.f32 %v82, %v322
  %v324 = vpop.f32.mrb[0].mxu0
  %325 = vmatprep.mubr.f32.mxu0 0.0
  %326 = vmatmul.mubr.f32.gmra.mrb[0].mxu0 %v160
  %v327 = vpop.f32.mrb[0].mxu0
  %v328 = vadd.f32 %v87, %v327
  %v329 = vpop.f32.mrb[0].mxu0
  %330 = vmatprep.mubr.f32.mxu0 0.0
  %331 = vmatmul.mubr.f32.gmra.mrb[0].mxu0 %v163
  %v332 = vpop.f32.mrb[0].mxu0
  %v333 = vadd.f32 %v92, %v332
  %v334 = vpop.f32.mrb[0].mxu0
  %335 = vmatprep.mubr.f32.mxu0 0.0
  %336 = vmatmul.mubr.f32.gmra.mrb[0].mxu0 %v166
  %v337 = vpop.f32.mrb[0].mxu0
  %v338 = vadd.f32 %v97, %v337
  %v339 = vpop.f32.mrb[0].mxu0
  %340 = vmatprep.mubr.f32.mxu0 0.0
  %341 = vmatmul.mubr.f32.gmra.mrb[0].mxu0 %v169
  %v342 = vpop.f32.mrb[0].mxu0
  %v343 = vadd.f32 %v102, %v342
  %v344 = vpop.f32.mrb[0].mxu0
  %345 = vmatprep.mubr.f32.mxu0 0.0
  %346 = vmatmul.mubr.f32.gmra.mrb[0].mxu0 %v172
  %v347 = vpop.f32.mrb[0].mxu0
  %v348 = vadd.f32 %v107, %v347
  %v349 = vpop.f32.mrb[0].mxu0
  %350 = vmatprep.mubr.f32.mxu0 0.0
  %351 = vmatmul.mubr.f32.gmra.mrb[0].mxu0 %v175
  %v352 = vpop.f32.mrb[0].mxu0
  %v353 = vadd.f32 %v112, %v352
  %v354 = vpop.f32.mrb[0].mxu0
  %355 = vmatprep.mubr.f32.mxu0 0.0
  %356 = vmatmul.mubr.f32.gmra.mrb[0].mxu0 %v178
  %v357 = vpop.f32.mrb[0].mxu0
  %v358 = vadd.f32 %v117, %v357
  %v359 = vpop.f32.mrb[0].mxu0
  %360 = vmatprep.mubr.f32.mxu0 0.0
  %361 = vmatmul.mubr.f32.gmra.mrb[0].mxu0 %v181
  %v362 = vpop.f32.mrb[0].mxu0
  %v363 = vadd.f32 %v122, %v362
  %v364 = vpop.f32.mrb[0].mxu0
  %365 = vmatprep.mubr.f32.mxu0 0.0
  %366 = vmatmul.mubr.f32.gmra.mrb[0].mxu0 %v184
  %v367 = vpop.f32.mrb[0].mxu0
  %v368 = vadd.f32 %v127, %v367
  %v369 = vpop.f32.mrb[0].mxu0
  %370 = vmatprep.mubr.f32.mxu0 0.0
  %371 = vmatmul.mubr.f32.gmra.mrb[0].mxu0 %v187
  %v372 = vpop.f32.mrb[0].mxu0
  %v373 = vadd.f32 %v132, %v372
  %v374 = vpop.f32.mrb[0].mxu0
  %375 = vmatprep.mubr.f32.mxu0 0.0
  %376 = vmatmul.mubr.f32.gmra.mrb[0].mxu0 %v190
  %v377 = vpop.f32.mrb[0].mxu0
  %v378 = vadd.f32 %v137, %v377
  %v379 = vpop.f32.mrb[0].mxu0
  %380 = vmatprep.mubr.f32.mxu0 0.0
  %381 = vmatmul.mubr.f32.gmra.mrb[0].mxu0 %v193
  %v382 = vpop.f32.mrb[0].mxu0
  %v383 = vadd.f32 %v142, %v382
  %v384 = vpop.f32.mrb[0].mxu0
  %385 = vmatprep.mubr.f32.mxu0 0.0
  %386 = vmatmul.mubr.f32.gmra.mrb[0].mxu0 %v196
  %v387 = vpop.f32.mrb[0].mxu0
  %v388 = vadd.f32 %v147, %v387
  %v389 = vpop.f32.mrb[0].mxu0
  %390 = vdwg.mxu0
  %v391 = vmul.f32 %v313, 0.5
  %v392 = vmul.f32 %v318, 0.5
  %v393 = vmul.f32 %v323, 0.5
  %v394 = vmul.f32 %v328, 0.5
  %v395 = vmul.f32 %v333, 0.5
  %v396 = vmul.f32 %v338, 0.5
  %v397 = vmul.f32 %v343, 0.5
  %v398 = vmul.f32 %v348, 0.5
  %v399 = vmul.f32 %v353, 0.5
  %v400 = vmul.f32 %v358, 0.5
  %v401 = vmul.f32 %v363, 0.5
  %v402 = vmul.f32 %v368, 0.5
  %v403 = vmul.f32 %v373, 0.5
  %v404 = vmul.f32 %v378, 0.5
  %v405 = vmul.f32 %v383, 0.5
  %v406 = vmul.f32 %v388, 0.5
  %v407 = vtanh.pop %v391
  %v408 = vtanh.pop %v392
  %v409 = vtanh.pop %v393
  %v410 = vtanh.pop %v394
  %v411 = vtanh.pop %v395
  %v412 = vtanh.pop %v396
  %v413 = vtanh.pop %v397
  %v414 = vtanh.pop %v398
  %v415 = vtanh.pop %v399
  %v416 = vtanh.pop %v400
  %v417 = vtanh.pop %v401
  %v418 = vtanh.pop %v402
  %v419 = vtanh.pop %v403
  %v420 = vtanh.pop %v404
  %v421 = vtanh.pop %v405
  %v422 = vtanh.pop %v406
  %v423 = vmul.f32 %v407, 0.5
  %v424 = vmul.f32 %v408, 0.5
  %v425 = vmul.f32 %v409, 0.5
  %v426 = vmul.f32 %v410, 0.5
  %v427 = vmul.f32 %v411, 0.5
  %v428 = vmul.f32 %v412, 0.5
  %v429 = vmul.f32 %v413, 0.5
  %v430 = vmul.f32 %v414, 0.5
  %v431 = vmul.f32 %v415, 0.5
  %v432 = vmul.f32 %v416, 0.5
  %v433 = vmul.f32 %v417, 0.5
  %v434 = vmul.f32 %v418, 0.5
  %v435 = vmul.f32 %v419, 0.5
  %v436 = vmul.f32 %v420, 0.5
  %v437 = vmul.f32 %v421, 0.5
  %v438 = vmul.f32 %v422, 0.5
  %v439 = vadd.f32 %v423, 0.5
  %v440 = vadd.f32 %v424, 0.5
  %v441 = vadd.f32 %v425, 0.5
  %v442 = vadd.f32 %v426, 0.5
  %v443 = vadd.f32 %v427, 0.5
  %v444 = vadd.f32 %v428, 0.5
  %v445 = vadd.f32 %v429, 0.5
  %v446 = vadd.f32 %v430, 0.5
  %v447 = vadd.f32 %v431, 0.5
  %v448 = vadd.f32 %v432, 0.5
  %v449 = vadd.f32 %v433, 0.5
  %v450 = vadd.f32 %v434, 0.5
  %v451 = vadd.f32 %v435, 0.5
  %v452 = vadd.f32 %v436, 0.5
  %v453 = vadd.f32 %v437, 0.5
  %v454 = vadd.f32 %v438, 0.5
  %v455 = vld [vmem:[%s3] sm:$0x1]
  %s456 = sld [smem:[#allocation2]]
  %v457 = vstv %s456
  %458 = vmatprep.subr.mxu0 0.0
  %459 = vmatpush1.msra.mxu0 %v439
  %460 = vmatprep.subr.mxu0 0.0
  %461 = vmatpush1.msra.mxu0 %v440
  %462 = vmatprep.subr.mxu0 0.0
  %463 = vmatpush1.msra.mxu0 %v441
  %464 = vmatprep.subr.mxu0 0.0
  %465 = vmatpush1.msra.mxu0 %v442
  %466 = vmatprep.subr.mxu0 0.0
  %467 = vmatpush1.msra.mxu0 %v443
  %468 = vmatprep.subr.mxu0 0.0
  %469 = vmatpush1.msra.mxu0 %v444
  %470 = vmatprep.subr.mxu0 0.0
  %471 = vmatpush1.msra.mxu0 %v445
  %472 = vmatprep.subr.mxu0 0.0
  %473 = vmatpush1.msra.mxu0 %v446
  %474 = vmatprep.subr.mxu0 0.0
  %475 = vmatpush1.msra.mxu0 %v447
  %476 = vmatprep.subr.mxu0 0.0
  %477 = vmatpush1.msra.mxu0 %v448
  %478 = vmatprep.subr.mxu0 0.0
  %479 = vmatpush1.msra.mxu0 %v449
  %480 = vmatprep.subr.mxu0 0.0
  %481 = vmatpush1.msra.mxu0 %v450
  %482 = vmatprep.subr.mxu0 0.0
  %483 = vmatpush1.msra.mxu0 %v451
  %484 = vmatprep.subr.mxu0 0.0
  %485 = vmatpush1.msra.mxu0 %v452
  %486 = vmatprep.subr.mxu0 0.0
  %487 = vmatpush1.msra.mxu0 %v453
  %488 = vmatprep.subr.mxu0 0.0
  %489 = vmatpush1.msra.mxu0 %v454
  %490 = vmatprep.subr.mxu0 0.0
  %491 = vmatpush1.msra.mxu0 0.0
  %492 = vmatprep.subr.mxu0 0.0
  %493 = vmatpush1.msra.mxu0 0.0
  %494 = vmatprep.subr.mxu0 0.0
  %495 = vmatpush1.msra.mxu0 0.0
  %496 = vmatprep.subr.mxu0 0.0
  %497 = vmatpush1.msra.mxu0 0.0
  %498 = vmatprep.subr.mxu0 0.0
  %499 = vmatpush1.msra.mxu0 0.0
  %500 = vmatprep.subr.mxu0 0.0
  %501 = vmatpush1.msra.mxu0 0.0
  %502 = vmatprep.subr.mxu0 0.0
  %503 = vmatpush1.msra.mxu0 0.0
  %504 = vmatprep.subr.mxu0 0.0
  %505 = vmatpush1.msra.mxu0 0.0
  %506 = vmatprep.subr.mxu0 0.0
  %507 = vmatpush1.msra.mxu0 0.0
  %508 = vmatprep.subr.mxu0 0.0
  %509 = vmatpush1.msra.mxu0 0.0
  %510 = vmatprep.subr.mxu0 0.0
  %511 = vmatpush1.msra.mxu0 0.0
  %512 = vmatprep.subr.mxu0 0.0
  %513 = vmatpush1.msra.mxu0 0.0
  %514 = vmatprep.subr.mxu0 0.0
  %515 = vmatpush1.msra.mxu0 0.0
  %516 = vmatprep.subr.mxu0 0.0
  %517 = vmatpush1.msra.mxu0 0.0
  %518 = vmatprep.subr.mxu0 0.0
  %519 = vmatpush1.msra.mxu0 0.0
  %520 = vmatprep.subr.mxu0 0.0
  %521 = vmatpush1.msra.mxu0 0.0
  %522 = vmatprep.mubr.f32.mxu0 0.0
  %523 = vmatmul.mubr.f32.gmra.mrb[0].mxu0 %v455
  %v524 = vpop.f32.mrb[0].mxu0
  %v525 = vadd.f32 %v457, %v524
  %v526 = vpop.f32.mrb[0].mxu0
  %527 = vdwg.mxu0
  %v528 = vmul.f32 %v525, 0.5
  %v529 = vtanh.pop %v528
  %v530 = vmul.f32 %v529, 0.5
  %v531 = vadd.f32 %v530, 0.5
  %532 = vst [vmem:[%s5] sm:$0x1] %v531
  // Predicated region
  $region22: #{model2_2_forward.1} parent=0 // pred_check
    _
  $region23: #{model2_2_forward.1} parent=0 // pred_check_branch
    %534 = sbr.rel (0) target = $region25
  $region24: #{model2_2_forward.1} parent=0 // pred_region
    _
  $region25: #{model2_2_forward.1} parent=0 // pred_fallthru
    _
  // Predicated region
  $region26: #{model2_2_forward.1} parent=0 // pred_check
    _
  $region27: #{model2_2_forward.1} parent=0 // pred_check_branch
    %536 = sbr.rel (0) target = $region29
  $region28: #{model2_2_forward.1} parent=0 // pred_region
    _
  $region29: #{model2_2_forward.1} parent=0 // pred_fallthru
    _

</llo_original>
